<compile_context>
chip_gen: v5e
topology: v5e:2x2
jax: 0.10.0
libtpu: 0.0.40
codegen_flags: <defaults>
</compile_context>

<pallas_src>
import math

import jax
import jax.numpy as jnp
from jax.experimental import pallas as pl
from jax.experimental.pallas import tpu as pltpu


# --------------------------------------------------------------------------
# 1) Zero-copy identity (primary path used by forward)
# --------------------------------------------------------------------------
def _alias_noop_kernel(x_hbm_ref, o_hbm_ref):
    # The output buffer IS the input buffer (input_output_aliases={0: 0}) and
    # both stay in HBM (memory_space=pl.ANY): nothing to move, nothing to do.
    del x_hbm_ref, o_hbm_ref


def pallas_identity(x):
    """Identity pre->backbone->post with the copy eliminated entirely."""
    return pl.pallas_call(
        _alias_noop_kernel,
        out_shape=jax.ShapeDtypeStruct(x.shape, x.dtype),
        in_specs=[pl.BlockSpec(memory_space=pl.ANY)],
        out_specs=pl.BlockSpec(memory_space=pl.ANY),
        input_output_aliases={0: 0},
        compiler_params=pltpu.CompilerParams(has_side_effects=True),
    )(x)


# --------------------------------------------------------------------------
# 2) Materializing identity copy (only when a fresh buffer is required)
# --------------------------------------------------------------------------
_LANE = 128
_LANE_CANDIDATES = (32768, 16384, 8192, 4096, 2048, 1024, 512, 256, 128)
_SMALL_SPLIT_BYTES = 1 << 20          # below this, never split for megacore
_SUBLANE_MIN = {4: 8, 2: 16, 1: 32}   # itemsize -> minimum sublane tile


def _round_up(a, b):
    return ((a + b - 1) // b) * b


_CHIP_INFO = None


def _chip_info():
    """(num_tensorcores, physical VMEM bytes/core, is_v7x) — best effort."""
    global _CHIP_INFO
    if _CHIP_INFO is not None:
        return _CHIP_INFO
    kind = ""
    try:
        kind = jax.devices()[0].device_kind.lower()
    except Exception:
        pass
    is_v7 = "7" in kind                       # v7x: 2 TCs/chip, 64 MiB VMEM/TC
    num_tc = 2 if is_v7 else 1                # v5e / v6e: 1 TC, 128 MiB VMEM
    vmem_phys = (64 << 20) if is_v7 else (128 << 20)
    try:
        info = pltpu.get_tpu_info()
        cap = int(getattr(info, "vmem_capacity_bytes", 0) or 0)
        if cap > 0:
            vmem_phys = cap
    except Exception:
        pass
    _CHIP_INFO = (num_tc, vmem_phys, is_v7)
    return _CHIP_INFO


def _choose_view(shape):
    """Pick a lane-dense 2-D view (M, N) of the contiguous tensor."""
    total = math.prod(shape)
    # Widest multiple-of-128 lane dim dividing the flat size -> unmasked vst.
    for ln in _LANE_CANDIDATES:
        if total % ln == 0:
            return total // ln, ln
    # total not divisible by 128: pick the divisor in [128, 4096] with minimal
    # lane-padding waste (the old natural H*W fallback could waste >60%).
    best, best_waste = None, 2.0
    for d in range(128, min(total, 4096) + 1):
        if total % d == 0:
            waste = ((-d) % _LANE) / float(_round_up(d, _LANE))
            if waste < best_waste:
                best, best_waste = d, waste
    if best is not None:
        return total // best, best
    # Tiny / prime sizes: natural trailing-dims view (full-dim blocks stay legal).
    n = shape[-1] * shape[-2] if len(shape) >= 2 else shape[-1]
    return total // n, n


def _choose_tiles(M, N, itemsize, sublane_min, tile_budget, num_tc):
    """Pick (tm, tn) block shape sized against the per-generation VMEM budget."""
    # ---- lane (last-dim) tile: keep it wide and 128-dense ----
    if N <= 8192:
        tn = N                                          # full lane dim: always legal
    else:
        tn = next((c for c in _LANE_CANDIDATES if N % c == 0), 0)
        if tn == 0:                                     # huge ragged N (rare)
            tn = N if N * sublane_min * itemsize <= tile_budget else 8192

    # ---- sublane tile: grow toward the per-tile budget ----
    rows_budget = max(1, tile_budget // (tn * itemsize))
    if rows_budget >= M or M <= sublane_min:
        tm = M                                          # whole axis fits in one block
    else:
        tm = max(sublane_min, (rows_budget // sublane_min) * sublane_min)

    # ---- only force a >=2-way leading split on multi-TC chips (v7x). On
    # single-TC v5e/v6e the split is pure per-step overhead. ----
    if (num_tc >= 2 and tm == M and M > 2 * sublane_min
            and M * tn * itemsize > _SMALL_SPLIT_BYTES):
        tm = _round_up((M + 1) // 2, sublane_min)

    return tm, tn


def _identity_copy_kernel(x_ref, o_ref):
    o_ref[...] = x_ref[...]


def pallas_identity_copy(x):
    """Materializing identity: one lane-dense tiled HBM->VMEM->HBM pass.

    NOTE: x.reshape(M, N) is only free for the default row-major layout; a
    non-default upstream layout would make XLA insert a copy before this call.
    """
    shape = x.shape
    itemsize = jnp.dtype(x.dtype).itemsize
    sublane_min = _SUBLANE_MIN.get(itemsize, 8)
    num_tc, vmem_phys, is_v7 = _chip_info()

    # Copy roofline saturates by ~4 MiB tiles; v7x only has 64 MiB VMEM/TC.
    tile_budget = (4 << 20) if is_v7 else (8 << 20)

    total = math.prod(shape)
    M, N = _choose_view(shape)
    tm, tn = _choose_tiles(M, N, itemsize, sublane_min, tile_budget, num_tc)
    grid = (pl.cdiv(M, tm), pl.cdiv(N, tn))

    # VMEM limit from the actual double-buffered (in + out) footprint.
    tile_bytes = tm * tn * itemsize
    vmem_limit = int(min(vmem_phys * 3 // 4,
                         max(4 * tile_bytes + (8 << 20), 32 << 20)))

    if num_tc >= 2 and grid[0] >= 2:
        # Only CORE_PARALLEL actually shards the grid across v7x's 2 TCs.
        dims = (pltpu.CORE_PARALLEL, pltpu.PARALLEL)
    else:
        dims = ("parallel", "parallel")

    x2d = x.reshape(M, N)   # contiguous reshape: free for row-major inputs
    y2d = pl.pallas_call(
        _identity_copy_kernel,
        out_shape=jax.ShapeDtypeStruct((M, N), x.dtype),
        grid=grid,
        in_specs=[pl.BlockSpec((tm, tn), lambda i, j: (i, j))],
        out_specs=pl.BlockSpec((tm, tn), lambda i, j: (i, j)),
        compiler_params=pltpu.CompilerParams(
            dimension_semantics=dims,
            vmem_limit_bytes=vmem_limit),
        cost_estimate=pl.CostEstimate(
            flops=0, transcendentals=0, bytes_accessed=2 * total * itemsize),
    )(x2d)
    return y2d.reshape(shape)


# --------------------------------------------------------------------------
# ModelManager mirror (forward-pass semantics only)
# --------------------------------------------------------------------------
class ModelManagerPallas:
    """JAX/Pallas mirror of ModelManager (forward-pass semantics only)."""

    def __init__(self, config):
        self.config = config

        # create_pre
        if config["pre_model"] == "Identity":
            self.pre_feature_channels = [config["C"]]
        else:
            raise NotImplementedError(f"Pre model not implemented: {config['pre_model']}")

        # create_backbone
        if config["backbone_model"] == "Identity":
            self.feature_channels = list(self.pre_feature_channels)
        else:
            raise NotImplementedError(
                f"Backbone model not implemented: {config['backbone_model']}")

        # create_post
        if config["post_model"] != "Identity":
            raise NotImplementedError(f"Post model not implemented: {config['post_model']}")

    def forward(self, x):
        # x: (B, C, D/T, H, W)
        # pre(x) -> [x]; backbone([x][-1]) -> [x]; post(list) -> list; return [-1]
        # All three stages are Identity; the Pallas call aliases output to
        # input (memory_space=pl.ANY, empty body) so no HBM copy is issued.
        return pallas_identity(x)

    __call__ = forward


if __name__ == "__main__":
    # Main test: 5-D "B C D/T H W" input, f32.
    B, C, D, H, W = 2, 4, 4, 16, 16
    key = jax.random.PRNGKey(0)
    x = jax.random.normal(key, (B, C, D, H, W), dtype=jnp.float32)

    config = {
        "pre_model": "Identity",
        "backbone_model": "Identity",
        "post_model": "Identity",
        "C": C,
    }
    model = ModelManagerPallas(config)

    # Primary (zero-copy, aliased) path used by forward().
    out = jax.block_until_ready(model(x))
    assert out.shape == x.shape, (out.shape, x.shape)
    assert out.dtype == x.dtype, (out.dtype, x.dtype)
    assert bool(jnp.array_equal(out, x)), "identity (aliased) mismatch"

    # Materializing copy path (lane-dense tiled memcpy), f32.
    out_c = jax.block_until_ready(pallas_identity_copy(x))
    assert out_c.shape == x.shape and out_c.dtype == x.dtype
    assert bool(jnp.array_equal(out_c, x)), "identity (copy) mismatch (f32)"

    # Ragged bf16 (15x15) exercises the non-128-multiple lane fallback.
    x2 = jax.random.normal(jax.random.PRNGKey(1), (1, 3, 2, 15, 15),
                           dtype=jnp.bfloat16)
    out2 = jax.block_until_ready(pallas_identity_copy(x2))
    assert out2.shape == x2.shape and out2.dtype == x2.dtype
    assert bool(jnp.array_equal(out2, x2)), "identity (copy) mismatch (bf16 ragged)"

    print("KERNEL_OK")
</pallas_src>

<mosaic_0001>
module attributes {stable_mosaic.version = 11 : i64} {
  func.func @_alias_noop_kernel(%arg0: memref<2x4x4x16x16xf32, #tpu.memory_space<any>>, %arg1: memref<2x4x4x16x16xf32, #tpu.memory_space<any>>) attributes {dimension_semantics = [], scalar_prefetch = 0 : i64, scratch_operands = 0 : i64, tpu.core_type = #tpu.core_type<tc>} {
    return
  }
}

</mosaic_0001>

<llo_original>
// kernel: tpu_custom_call.1
$region0: #{tpu_custom_call.1}
  #allocation0 [shape = 'u32[]', space=smem, size = 0x4, offset = 0x4, fixed_abs, tag = 'smem constant byte address 0x4 - core index']
  #allocation1 [shape = 'u32[72,128]{1,0:T(1,128)}', space=vmem, size = 0x9000, scoped, tag = 'internal scratch']
  %s0 = inlined_call_operand.hbm [shape: f32[2,4,4,16,16], index: 0, kind: input, shape index: {}, may-alias: {0,1}]
  %s1 = inlined_call_operand.hbm [shape: f32[2,4,4,16,16], index: 1, kind: output, shape index: {}, may-alias: {0,1}]
  %s2 = sld [smem:[#allocation0]]
  $region2: #{tpu_custom_call.1} parent=0
    _
  %s4 = ssub.s32 1, %s2
  %s5 = scalar_select 0, %s4, %s2

</llo_original>
